<compile_context>
chip_gen: v5e
topology: v5e:2x2
jax: 0.10.0
libtpu: 0.0.40
codegen_flags: <defaults>
</compile_context>

<pallas_src>
import jax
import jax.numpy as jnp
from jax.experimental import pallas as pl
from jax.experimental.pallas import tpu as pltpu


def _round_up(n, m):
    return ((n + m - 1) // m) * m


def _rnn_seq_kernel(x_ref, wx_ref, wh_ref, b_ref, h0_ref, out_ref, h_scratch):
    """One grid step == one RNN timestep.

    x_ref:  (B_pad, I)      current timestep input
    wx_ref: (I, H+O)        fused weight rows acting on x
    wh_ref: (H, H+O)        fused weight rows acting on hidden
    b_ref:  (1, H+O)        fused bias
    h0_ref: (B_pad, H)      initial hidden state
    out_ref:(B_pad, H+O)    fused output slab: [:, :H] = new hidden, [:, H:] = log-softmax
    h_scratch: (B_pad, H)   VMEM-resident hidden state, persists across grid steps
    """
    t = pl.program_id(0)
    H = h_scratch.shape[1]

    @pl.when(t == 0)
    def _():
        h_scratch[...] = h0_ref[...]

    x_t = x_ref[...]
    h = h_scratch[...]

    # Fused pre-activation of both Linear layers:
    #   z = [x_t | h] @ W_fused + b_fused, computed as a split dot so the
    #   (input, hidden) concat never materializes. f32 MXU accumulation.
    z = (jnp.dot(x_t, wx_ref[...], preferred_element_type=jnp.float32)
         + jnp.dot(h, wh_ref[...], preferred_element_type=jnp.float32)
         + b_ref[...])                                   # (B_pad, H+O)

    hid_new = z[:, :H]                                   # i2h result
    logits = z[:, H:]                                    # i2o result

    # Numerically stable log-softmax over the feature axis (dim=1).
    m = jnp.max(logits, axis=1, keepdims=True)
    shifted = logits - m
    lse = jnp.log(jnp.sum(jnp.exp(shifted), axis=1, keepdims=True))
    logp = shifted - lse

    h_scratch[...] = hid_new
    # Single lane-denser store of the fused (hidden | log-softmax) slab.
    out_ref[...] = jnp.concatenate([hid_new, logp], axis=1).astype(out_ref.dtype)


def prepare_params(w_i2h, b_i2h, w_i2o, b_i2o):
    """Hoisted (one-time) weight prep: fuse the two PyTorch-layout Linear
    layers and pre-transpose to row-major (in, out) layout.

    w_i2h: (H, I+H), b_i2h: (H,), w_i2o: (O, I+H), b_i2o: (O,)
    Returns wx: (I, H+O), wh: (H, H+O), b: (1, H+O).
    """
    H = w_i2h.shape[0]
    O = w_i2o.shape[0]
    IH = w_i2h.shape[1]
    I = IH - H
    w_fused = jnp.concatenate(
        [jnp.asarray(w_i2h, jnp.float32), jnp.asarray(w_i2o, jnp.float32)],
        axis=0).T                                        # (I+H, H+O)
    wx = w_fused[:I, :]                                  # rows acting on x
    wh = w_fused[I:, :]                                  # rows acting on hidden
    b = jnp.concatenate([jnp.asarray(b_i2h, jnp.float32),
                         jnp.asarray(b_i2o, jnp.float32)]).reshape(1, H + O)
    return wx, wh, b


def rnn_sequence(xs, hidden0, wx, wh, b):
    """Run the RNN cell over a whole sequence in ONE kernel launch.

    xs: (T, B, I), hidden0: (B, H); wx/wh/b from prepare_params.
    Returns (log-softmax outputs (T, B, O), final hidden (B, H)).
    """
    T, B, I = xs.shape
    H = wh.shape[0]
    HO = wh.shape[1]

    # Pad batch up to a sublane multiple (8) so stores are better aligned.
    B_pad = _round_up(max(B, 1), 8)
    if B_pad != B:
        xs = jnp.pad(xs, ((0, 0), (0, B_pad - B), (0, 0)))
        hidden0 = jnp.pad(hidden0, ((0, B_pad - B), (0, 0)))

    xs = xs.astype(jnp.float32)
    hidden0 = hidden0.astype(jnp.float32)

    out = pl.pallas_call(
        _rnn_seq_kernel,
        out_shape=jax.ShapeDtypeStruct((T, B_pad, HO), jnp.float32),
        grid_spec=pltpu.PrefetchScalarGridSpec(
            num_scalar_prefetch=0,
            grid=(T,),
            in_specs=[
                # x_t streamed per timestep; leading (time) dim squeezed away.
                pl.BlockSpec((pl.Squeezed(), B_pad, I), lambda t: (t, 0, 0)),
                # Weights / bias / h0 resident across the whole sequence.
                pl.BlockSpec((I, HO), lambda t: (0, 0)),
                pl.BlockSpec((H, HO), lambda t: (0, 0)),
                pl.BlockSpec((1, HO), lambda t: (0, 0)),
                pl.BlockSpec((B_pad, H), lambda t: (0, 0)),
            ],
            out_specs=pl.BlockSpec((pl.Squeezed(), B_pad, HO), lambda t: (t, 0, 0)),
            scratch_shapes=[pltpu.VMEM((B_pad, H), jnp.float32)],
        ),
        compiler_params=pltpu.CompilerParams(
            # Recurrence over time: steps must run sequentially.
            dimension_semantics=("arbitrary",)),
    )(xs, wx, wh, b, hidden0)

    outputs = out[:, :B, H:]           # (T, B, O) log-softmax outputs
    final_hidden = out[-1, :B, :H]     # (B, H)
    return outputs, final_hidden


def rnn_forward(x, hidden, w_i2h, b_i2h, w_i2o, b_i2o):
    """Single-step forward with the exact nn.Module signature / semantics."""
    wx, wh, b = prepare_params(w_i2h, b_i2h, w_i2o, b_i2o)
    out_seq, new_hidden = rnn_sequence(x[None], hidden, wx, wh, b)
    return out_seq[0], new_hidden


if __name__ == "__main__":
    # Small shapes consistent with the module's forward signature.
    batch = 2
    input_size = 16
    hidden_size = 32
    output_size = 16
    seq_len = 8

    key = jax.random.PRNGKey(0)
    k_x, k_w1, k_b1, k_w2, k_b2 = jax.random.split(key, 5)

    xs = jax.random.normal(k_x, (seq_len, batch, input_size), dtype=jnp.float32)
    hidden0 = jnp.zeros((batch, hidden_size), dtype=jnp.float32)  # initHidden()

    # Deterministic parameter init (PyTorch Linear-style uniform bounds).
    fan_in = input_size + hidden_size
    bound = float(fan_in) ** -0.5
    w_i2h = jax.random.uniform(k_w1, (hidden_size, fan_in),
                               minval=-bound, maxval=bound, dtype=jnp.float32)
    b_i2h = jax.random.uniform(k_b1, (hidden_size,),
                               minval=-bound, maxval=bound, dtype=jnp.float32)
    w_i2o = jax.random.uniform(k_w2, (output_size, fan_in),
                               minval=-bound, maxval=bound, dtype=jnp.float32)
    b_i2o = jax.random.uniform(k_b2, (output_size,),
                               minval=-bound, maxval=bound, dtype=jnp.float32)

    def ref_step(x, h):
        combined = jnp.concatenate([x, h], axis=1)
        new_h = combined @ w_i2h.T + b_i2h
        logits = combined @ w_i2o.T + b_i2o
        return jax.nn.log_softmax(logits, axis=1), new_h

    # --- Single step: exact module forward semantics -------------------------
    out1, hid1 = rnn_forward(xs[0], hidden0, w_i2h, b_i2h, w_i2o, b_i2o)
    jax.block_until_ready((out1, hid1))
    ref_out1, ref_hid1 = ref_step(xs[0], hidden0)
    assert jnp.allclose(out1, ref_out1, atol=1e-5), "single-step output mismatch"
    assert jnp.allclose(hid1, ref_hid1, atol=1e-5), "single-step hidden mismatch"

    # --- Full sequence: recurrence fused inside one kernel launch ------------
    wx, wh, b_fused = prepare_params(w_i2h, b_i2h, w_i2o, b_i2o)  # hoisted once
    outs, hid_final = rnn_sequence(xs, hidden0, wx, wh, b_fused)
    jax.block_until_ready((outs, hid_final))

    # Reference: unrolled loop of the PyTorch-equivalent cell.
    h = hidden0
    ref_outs = []
    for t in range(seq_len):
        o, h = ref_step(xs[t], h)
        ref_outs.append(o)
    ref_outs = jnp.stack(ref_outs)

    assert jnp.allclose(outs, ref_outs, atol=1e-4), "sequence output mismatch"
    assert jnp.allclose(hid_final, h, atol=1e-4), "final hidden mismatch"
    assert jnp.allclose(jnp.sum(jnp.exp(outs), axis=-1), 1.0, atol=1e-4)

    print("KERNEL_OK")
</pallas_src>

<mosaic_0001>
module attributes {stable_mosaic.version = 11 : i64} {
  func.func @_rnn_seq_kernel(%arg0: i32, %arg1: memref<1x8x16xf32, #tpu.memory_space<vmem>>, %arg2: memref<16x48xf32, #tpu.memory_space<vmem>>, %arg3: memref<32x48xf32, #tpu.memory_space<vmem>>, %arg4: memref<1x48xf32, #tpu.memory_space<vmem>>, %arg5: memref<8x32xf32, #tpu.memory_space<vmem>>, %arg6: memref<1x8x48xf32, #tpu.memory_space<vmem>>, %arg7: memref<8x32xf32, #tpu.memory_space<vmem>>) attributes {dimension_semantics = [#tpu.dimension_semantics<arbitrary>], iteration_bounds = array<i64: 1>, scalar_prefetch = 0 : i64, scratch_operands = 1 : i64, tpu.core_type = #tpu.core_type<tc>, window_params = [{transform_indices = @transform_0, window_bounds = array<i64: 1, 8, 16>}, {pipeline_mode = #tpu.pipeline_mode<synchronous>, transform_indices = @transform_1, window_bounds = array<i64: 16, 48>}, {pipeline_mode = #tpu.pipeline_mode<synchronous>, transform_indices = @transform_2, window_bounds = array<i64: 32, 48>}, {pipeline_mode = #tpu.pipeline_mode<synchronous>, transform_indices = @transform_3, window_bounds = array<i64: 1, 48>}, {pipeline_mode = #tpu.pipeline_mode<synchronous>, transform_indices = @transform_4, window_bounds = array<i64: 8, 32>}, {transform_indices = @transform_5, window_bounds = array<i64: 1, 8, 48>}]} {
    %c0_i32 = arith.constant 0 : i32
    %0 = arith.cmpi eq, %arg0, %c0_i32 : i32
    %1 = arith.extui %0 : i1 to i32
    %c0_i32_0 = arith.constant 0 : i32
    %2 = arith.cmpi ne, %1, %c0_i32_0 : i32
    scf.if %2 {
      %c0_19 = arith.constant 0 : index
      %c0_20 = arith.constant 0 : index
      %31 = vector.load %arg5[%c0_19, %c0_20] : memref<8x32xf32, #tpu.memory_space<vmem>>, vector<8x32xf32>
      %c0_21 = arith.constant 0 : index
      %c0_22 = arith.constant 0 : index
      %32 = vector.load %arg7[%c0_21, %c0_22] : memref<8x32xf32, #tpu.memory_space<vmem>>, vector<8x32xf32>
      tpu.vector_store %arg7[%c0_21, %c0_22], %31 {strides = array<i32>} : memref<8x32xf32, #tpu.memory_space<vmem>>, vector<8x32xf32>,
    } else {
    }
    %c0 = arith.constant 0 : index
    %c0_1 = arith.constant 0 : index
    %c0_2 = arith.constant 0 : index
    %3 = vector.load %arg1[%c0, %c0_1, %c0_2] : memref<1x8x16xf32, #tpu.memory_space<vmem>>, vector<1x8x16xf32>
    %4 = vector.shape_cast %3 : vector<1x8x16xf32> to vector<8x16xf32>
    %c0_3 = arith.constant 0 : index
    %c0_4 = arith.constant 0 : index
    %5 = vector.load %arg7[%c0_3, %c0_4] : memref<8x32xf32, #tpu.memory_space<vmem>>, vector<8x32xf32>
    %c0_5 = arith.constant 0 : index
    %c0_6 = arith.constant 0 : index
    %6 = vector.load %arg2[%c0_5, %c0_6] : memref<16x48xf32, #tpu.memory_space<vmem>>, vector<16x48xf32>
    %cst = arith.constant dense<0.000000e+00> : vector<8x48xf32>
    %7 = tpu.matmul %4, %6, %cst {dimension_numbers = #tpu.dot_dimension_numbers<[1], [0], [0], [1], [0, 0, 1, 1], [], []>} : vector<8x16xf32>, vector<16x48xf32>, vector<8x48xf32> -> vector<8x48xf32>
    %c0_7 = arith.constant 0 : index
    %c0_8 = arith.constant 0 : index
    %8 = vector.load %arg3[%c0_7, %c0_8] : memref<32x48xf32, #tpu.memory_space<vmem>>, vector<32x48xf32>
    %cst_9 = arith.constant dense<0.000000e+00> : vector<8x48xf32>
    %9 = tpu.matmul %5, %8, %cst_9 {dimension_numbers = #tpu.dot_dimension_numbers<[1], [0], [0], [1], [0, 0, 1, 1], [], []>} : vector<8x32xf32>, vector<32x48xf32>, vector<8x48xf32> -> vector<8x48xf32>
    %10 = arith.addf %7, %9 : vector<8x48xf32>
    %c0_10 = arith.constant 0 : index
    %c0_11 = arith.constant 0 : index
    %11 = vector.load %arg4[%c0_10, %c0_11] : memref<1x48xf32, #tpu.memory_space<vmem>>, vector<1x48xf32>
    %12 = vector.broadcast %11 : vector<1x48xf32> to vector<8x48xf32>
    %13 = arith.addf %10, %12 : vector<8x48xf32>
    %14 = vector.extract_strided_slice %13 {offsets = [0, 0], sizes = [8, 32], strides = [1, 1]} : vector<8x48xf32> to vector<8x32xf32>
    %15 = vector.extract_strided_slice %13 {offsets = [0, 32], sizes = [8, 16], strides = [1, 1]} : vector<8x48xf32> to vector<8x16xf32>
    %cst_12 = arith.constant dense<0xFF800000> : vector<8xf32>
    %16 = vector.multi_reduction <maximumf>, %15, %cst_12 [1] : vector<8x16xf32> to vector<8xf32>
    %17 = vector.shape_cast %16 : vector<8xf32> to vector<8x1xf32>
    %18 = vector.broadcast %17 : vector<8x1xf32> to vector<8x16xf32>
    %19 = arith.subf %15, %18 : vector<8x16xf32>
    %20 = math.exp %19 : vector<8x16xf32>
    %cst_13 = arith.constant dense<0.000000e+00> : vector<8xf32>
    %21 = vector.multi_reduction <add>, %20, %cst_13 [1] : vector<8x16xf32> to vector<8xf32>
    %22 = vector.shape_cast %21 : vector<8xf32> to vector<8x1xf32>
    %23 = math.log %22 : vector<8x1xf32>
    %24 = vector.broadcast %23 : vector<8x1xf32> to vector<8x16xf32>
    %25 = arith.subf %19, %24 : vector<8x16xf32>
    %c0_14 = arith.constant 0 : index
    %c0_15 = arith.constant 0 : index
    %26 = vector.load %arg7[%c0_14, %c0_15] : memref<8x32xf32, #tpu.memory_space<vmem>>, vector<8x32xf32>
    tpu.vector_store %arg7[%c0_14, %c0_15], %14 {strides = array<i32>} : memref<8x32xf32, #tpu.memory_space<vmem>>, vector<8x32xf32>,
    %27 = tpu.concatenate %14, %25 in 1 : vector<8x32xf32>, vector<8x16xf32> -> vector<8x48xf32>
    %c0_16 = arith.constant 0 : index
    %c0_17 = arith.constant 0 : index
    %c0_18 = arith.constant 0 : index
    %28 = vector.load %arg6[%c0_16, %c0_17, %c0_18] : memref<1x8x48xf32, #tpu.memory_space<vmem>>, vector<1x8x48xf32>
    %29 = vector.shape_cast %28 : vector<1x8x48xf32> to vector<8x48xf32>
    %30 = vector.shape_cast %27 : vector<8x48xf32> to vector<1x8x48xf32>
    tpu.vector_store %arg6[%c0_16, %c0_17, %c0_18], %30 {strides = array<i32>} : memref<1x8x48xf32, #tpu.memory_space<vmem>>, vector<1x8x48xf32>,
    return
  }
  func.func @transform_0(%arg0: i32) -> (i32, i32, i32) {
    %c0_i32 = arith.constant 0 : i32
    %c0_i32_0 = arith.constant 0 : i32
    %c0_i32_1 = arith.constant 0 : i32
    return %arg0, %c0_i32, %c0_i32_0 : i32, i32, i32
  }
  func.func @transform_1(%arg0: i32) -> (i32, i32) {
    %c0_i32 = arith.constant 0 : i32
    %c0_i32_0 = arith.constant 0 : i32
    %c0_i32_1 = arith.constant 0 : i32
    return %c0_i32, %c0_i32_0 : i32, i32
  }
  func.func @transform_2(%arg0: i32) -> (i32, i32) {
    %c0_i32 = arith.constant 0 : i32
    %c0_i32_0 = arith.constant 0 : i32
    %c0_i32_1 = arith.constant 0 : i32
    return %c0_i32, %c0_i32_0 : i32, i32
  }
  func.func @transform_3(%arg0: i32) -> (i32, i32) {
    %c0_i32 = arith.constant 0 : i32
    %c0_i32_0 = arith.constant 0 : i32
    %c0_i32_1 = arith.constant 0 : i32
    return %c0_i32, %c0_i32_0 : i32, i32
  }
  func.func @transform_4(%arg0: i32) -> (i32, i32) {
    %c0_i32 = arith.constant 0 : i32
    %c0_i32_0 = arith.constant 0 : i32
    %c0_i32_1 = arith.constant 0 : i32
    return %c0_i32, %c0_i32_0 : i32, i32
  }
  func.func @transform_5(%arg0: i32) -> (i32, i32, i32) {
    %c0_i32 = arith.constant 0 : i32
    %c0_i32_0 = arith.constant 0 : i32
    %c0_i32_1 = arith.constant 0 : i32
    return %arg0, %c0_i32, %c0_i32_0 : i32, i32, i32
  }
}

</mosaic_0001>

<llo_original>
// kernel: tpu_custom_call.1
$region0: #{tpu_custom_call.1}
  #allocation0 [shape = 'u32[]', space=smem, size = 0x4, offset = 0x4, fixed_abs, tag = 'smem constant byte address 0x4 - core index']
  #allocation1 [shape = 'u32[72,128]{1,0:T(1,128)}', space=vmem, size = 0x9000, scoped, tag = 'internal scratch']
  #allocation2 [shape = 'f32[8,32]{1,0:T(8,128)}', space=vmem, size = 0x1000, scoped, tag = 'scratch operand']
  %s0 = inlined_call_operand.hbm [shape: f32[1,8,16], index: 0, kind: input, shape index: {}]
  %s1 = inlined_call_operand.hbm [shape: f32[16,48], index: 1, kind: input, shape index: {}]
  %s2 = inlined_call_operand.hbm [shape: f32[32,48], index: 2, kind: input, shape index: {}]
  %s3 = inlined_call_operand.vmem [shape: f32[1,48], index: 3, kind: input, shape index: {}]
  %s4 = inlined_call_operand.hbm [shape: f32[8,32], index: 4, kind: input, shape index: {}]
  %s5 = inlined_call_operand.hbm [shape: f32[1,8,48], index: 5, kind: output, shape index: {}]
  %s6 = sld [smem:[#allocation0]]
  $region50: #{tpu_custom_call.1} parent=0
    _
  %s8 = ssub.s32 1, %s6
  %s9 = scalar_select 0, %s8, %s6
  $region1: #{tpu_custom_call.1} parent=0
    #allocation3 [shape = 'u8[4096]{0}', space=vmem, size = 0x1000, scoped, tag = 'input window, operand 0, single buffered']
    #allocation4 [shape = 's32[1]{0}', space=sflag, size = 0x4, scoped, tag = 'scoped memory for tpu_custom_call.1']
    #allocation5 [shape = 's32[1]{0}', space=sflag, size = 0x4, scoped, tag = 'scoped memory for tpu_custom_call.1']
    #allocation6 [shape = 'u8[8192]{0}', space=vmem, size = 0x2000, scoped, tag = 'input window, operand 1, single buffered']
    #allocation7 [shape = 's32[1]{0}', space=sflag, size = 0x4, scoped, tag = 'scoped memory for tpu_custom_call.1']
    #allocation8 [shape = 'u8[16384]{0}', space=vmem, size = 0x4000, scoped, tag = 'input window, operand 2, single buffered']
    #allocation9 [shape = 'u8[4096]{0}', space=vmem, size = 0x1000, scoped, tag = 'input window, operand 4, single buffered']
    #allocation10 [shape = 's32[1]{0}', space=sflag, size = 0x4, scoped, tag = 'scoped memory for tpu_custom_call.1']
    #allocation11 [shape = 'u8[4096]{0}', space=vmem, size = 0x1000, scoped, tag = 'output window, operand 0, single buffered']
    %10 = vsyncpa [#allocation4], 0
    %11 = vsyncpa [#allocation7], 0
    %12 = vsyncpa [#allocation10], 0
    %13 = vsyncpa [#allocation5], 0
    // Predicated region
    $region2: #{tpu_custom_call.1} parent=1 // pred_check
      _
    $region3: #{tpu_custom_call.1} parent=1 // pred_check_branch
      %15 = sbr.rel (0) target = $region5
    $region4: #{tpu_custom_call.1} parent=1 // pred_region
      %17 = vsyncadd [#allocation4], 0
      %s19 = sshll.u32 %s0, 4
      %s20 = int_to_ptr.hbm [resolvable:$true] %s19
      %s21 = sshll.u32 [#allocation3], 4
      %s22 = int_to_ptr.vmem [resolvable:$true] %s21
      %24 = dma.hbm_to_vmem [thread:$0]  %s20, 128, %s22, [#allocation4]
    $region5: #{tpu_custom_call.1} parent=1 // pred_fallthru
      _
    // Predicated region
    $region6: #{tpu_custom_call.1} parent=1 // pred_check
      _
    $region7: #{tpu_custom_call.1} parent=1 // pred_check_branch
      %26 = sbr.rel (0) target = $region9
    $region8: #{tpu_custom_call.1} parent=1 // pred_region
      %28 = vsyncadd [#allocation7], 0
      %s29 = sshll.u32 %s1, 4
      %s30 = int_to_ptr.hbm [resolvable:$true] %s29
      %s31 = sshll.u32 [#allocation6], 4
      %s32 = int_to_ptr.vmem [resolvable:$true] %s31
      %37 = dma.hbm_to_vmem [thread:$0]  %s30, 256, %s32, [#allocation7], 128, 128, 8
    $region9: #{tpu_custom_call.1} parent=1 // pred_fallthru
      _
    // Predicated region
    $region10: #{tpu_custom_call.1} parent=1 // pred_check
      _
    $region11: #{tpu_custom_call.1} parent=1 // pred_check_branch
      %39 = sbr.rel (0) target = $region13
    $region12: #{tpu_custom_call.1} parent=1 // pred_region
      %41 = vsyncadd [#allocation7], 0
      %s42 = sshll.u32 %s2, 4
      %s43 = int_to_ptr.hbm [resolvable:$true] %s42
      %s44 = sshll.u32 [#allocation8], 4
      %s45 = int_to_ptr.vmem [resolvable:$true] %s44
      %50 = dma.hbm_to_vmem [thread:$0]  %s43, 512, %s45, [#allocation7], 128, 128, 8
    $region13: #{tpu_custom_call.1} parent=1 // pred_fallthru
      _
    // Predicated region
    $region14: #{tpu_custom_call.1} parent=1 // pred_check
      _
    $region15: #{tpu_custom_call.1} parent=1 // pred_check_branch
      %52 = sbr.rel (0) target = $region17
    $region16: #{tpu_custom_call.1} parent=1 // pred_region
      _
    $region17: #{tpu_custom_call.1} parent=1 // pred_fallthru
      _
    // Predicated region
    $region18: #{tpu_custom_call.1} parent=1 // pred_check
      _
    $region19: #{tpu_custom_call.1} parent=1 // pred_check_branch
      %54 = sbr.rel (0) target = $region21
    $region20: #{tpu_custom_call.1} parent=1 // pred_region
      %56 = vsyncadd [#allocation10], 0
      %s58 = sshll.u32 %s4, 4
      %s59 = int_to_ptr.hbm [resolvable:$true] %s58
      %s60 = sshll.u32 [#allocation9], 4
      %s61 = int_to_ptr.vmem [resolvable:$true] %s60
      %63 = dma.hbm_to_vmem [thread:$0]  %s59, 128, %s61, [#allocation10]
    $region21: #{tpu_custom_call.1} parent=1 // pred_fallthru
      _
    // Predicated region
    $region22: #{tpu_custom_call.1} parent=1 // pred_check
      _
    $region23: #{tpu_custom_call.1} parent=1 // pred_check_branch
      %65 = sbr.rel (0) target = $region25
    $region24: #{tpu_custom_call.1} parent=1 // pred_region
      %67 = dma.done [#allocation4], 128
    $region25: #{tpu_custom_call.1} parent=1 // pred_fallthru
      _
    // Predicated region
    $region26: #{tpu_custom_call.1} parent=1 // pred_check
      _
    $region27: #{tpu_custom_call.1} parent=1 // pred_check_branch
      %69 = sbr.rel (0) target = $region29
    $region28: #{tpu_custom_call.1} parent=1 // pred_region
      %71 = dma.done [#allocation7], 256
    $region29: #{tpu_custom_call.1} parent=1 // pred_fallthru
      _
    // Predicated region
    $region30: #{tpu_custom_call.1} parent=1 // pred_check
      _
    $region31: #{tpu_custom_call.1} parent=1 // pred_check_branch
      %73 = sbr.rel (0) target = $region33
    $region32: #{tpu_custom_call.1} parent=1 // pred_region
      %75 = dma.done [#allocation7], 512
    $region33: #{tpu_custom_call.1} parent=1 // pred_fallthru
      _
    // Predicated region
    $region34: #{tpu_custom_call.1} parent=1 // pred_check
      _
    $region35: #{tpu_custom_call.1} parent=1 // pred_check_branch
      %77 = sbr.rel (0) target = $region37
    $region36: #{tpu_custom_call.1} parent=1 // pred_region
      %79 = dma.done [#allocation10], 128
    $region37: #{tpu_custom_call.1} parent=1 // pred_fallthru
      _
    %p80 = scmp.eq.s32.totalorder 0, 0
    // Predicated region
    $region38: #{tpu_custom_call.1} parent=1 // pred_check
      %p81 = pneg %p80
    $region39: #{tpu_custom_call.1} parent=1 // pred_check_branch
      %83 = sbr.rel (%p81) target = $region41
    $region40: #{tpu_custom_call.1} parent=1 // pred_region
      %v84 = vld [vmem:[#allocation9] sm:$0xff]
      %vm85 = vcmask 261120
      %86 = vst.msk [vmem:[#allocation2] sm:$0xff] %vm85, %v84
    $region41: #{tpu_custom_call.1} parent=1 // pred_fallthru
      _
    %v87 = vld [vmem:[#allocation3] sm:$0xff]
    %v88 = vld [vmem:[#allocation2] sm:$0xff]
    %v89 = vld [vmem:[#allocation6] sm:$0xff]
    %v90 = vld [vmem:[#allocation6 + $0x8] sm:$0xff]
    %v91 = vld [vmem:[#allocation8] sm:$0xff]
    %v92 = vld [vmem:[#allocation8 + $0x8] sm:$0xff]
    %v93 = vld [vmem:[#allocation8 + $0x10] sm:$0xff]
    %v94 = vld [vmem:[#allocation8 + $0x18] sm:$0xff]
    %vm95 = vcmask 261120
    %v97 = vsel %vm95, %v88, 0
    %99 = vmatpush.msra.mxu0 0.0
    %100 = vmatpush.msra.mxu0 0.0
    %101 = vmatpush.msra.mxu0 0.0
    %102 = vmatpush.msra.mxu0 0.0
    %103 = vmatpush.msra.mxu0 0.0
    %104 = vmatpush.msra.mxu0 0.0
    %105 = vmatpush.msra.mxu0 0.0
    %106 = vmatpush.msra.mxu0 0.0
    %107 = vmatpush.msra.mxu0 0.0
    %108 = vmatpush.msra.mxu0 0.0
    %109 = vmatpush.msra.mxu0 0.0
    %110 = vmatpush.msra.mxu0 0.0
    %111 = vmatpush.msra.mxu0 %v94
    %112 = vmatpush.msra.mxu0 %v93
    %113 = vmatpush.msra.mxu0 %v92
    %114 = vmatpush.msra.mxu0 %v91
    %115 = vmatmul.f32.gmra.mxu0 %v97
    %v116 = vpop.f32.mrf.mxu0
    %v117 = vadd.f32 0.0, %v116
    %118 = vdwg.mxu0
    %vm119 = vcmask 130048
    %v121 = vsel %vm119, %v87, 0
    %123 = vmatpush.msra.mxu0 0.0
    %124 = vmatpush.msra.mxu0 0.0
    %125 = vmatpush.msra.mxu0 0.0
    %126 = vmatpush.msra.mxu0 0.0
    %127 = vmatpush.msra.mxu0 0.0
    %128 = vmatpush.msra.mxu0 0.0
    %129 = vmatpush.msra.mxu0 0.0
    %130 = vmatpush.msra.mxu0 0.0
    %131 = vmatpush.msra.mxu0 0.0
    %132 = vmatpush.msra.mxu0 0.0
    %133 = vmatpush.msra.mxu0 0.0
    %134 = vmatpush.msra.mxu0 0.0
    %135 = vmatpush.msra.mxu0 0.0
    %136 = vmatpush.msra.mxu0 0.0
    %137 = vmatpush.msra.mxu0 %v90
    %138 = vmatpush.msra.mxu0 %v89
    %139 = vmatmul.f32.gmra.mxu0 %v121
    %v140 = vpop.f32.mrf.mxu0
    %v141 = vadd.f32 %v117, %v140
    %142 = vdwg.mxu0
    %v143 = vld [vmem:[%s3] sm:$0x1]
    %v145 = vperm.slane %v143, 0
    %v147 = vadd.f32 %v141, %v145
    %vm148 = vcmask 392448
    %v149 = vsel %vm148, %v147, -inf
    %150 = vmax.xlane.f32.xlu0 %v149
    %v151 = vpop.xlane.xlu0 %150
    %v152 = vsub.f32 %v147, %v151
    %v153 = vmul.f32 %v152, 1.442695
    %v154 = vpow.pop %v153
    %156 = vrot.lane.b32.xlu0 %v154, 96
    %v157 = vpop.permute.xlu0 %156
    %v159 = vsel %vm119, %v157, 0.0
    %160 = vadd.xlane.f32.xlu0 %v159
    %v161 = vpop.xlane.xlu0 %160
    %v162 = vlog2.pop %v161
    %v163 = vmul.f32 %v162, 0.6931472
    %v164 = vsub.f32 %v152, %v163
    %165 = vst.msk [vmem:[#allocation2] sm:$0xff] %vm95, %v147
    %v166 = vsel %vm95, %v147, %v164
    %vm167 = vcmask 392192
    %168 = vst.msk [vmem:[#allocation11] sm:$0xff] %vm167, %v166
    // Predicated region
    $region42: #{tpu_custom_call.1} parent=1 // pred_check
      _
    $region43: #{tpu_custom_call.1} parent=1 // pred_check_branch
      %170 = sbr.rel (0) target = $region45
    $region44: #{tpu_custom_call.1} parent=1 // pred_region
      %172 = vsyncadd [#allocation5], 0
      %s174 = sshll.u32 [#allocation11], 4
      %s175 = int_to_ptr.vmem [resolvable:$true] %s174
      %s176 = sshll.u32 %s5, 4
      %s177 = int_to_ptr.hbm [resolvable:$true] %s176
      %179 = dma.vmem_to_hbm [thread:$0]  %s175, 128, %s177, [#allocation5]
    $region45: #{tpu_custom_call.1} parent=1 // pred_fallthru
      _
    // Predicated region
    $region46: #{tpu_custom_call.1} parent=1 // pred_check
      _
    $region47: #{tpu_custom_call.1} parent=1 // pred_check_branch
      %181 = sbr.rel (0) target = $region49
    $region48: #{tpu_custom_call.1} parent=1 // pred_region
      %183 = dma.done [#allocation5], 128
    $region49: #{tpu_custom_call.1} parent=1 // pred_fallthru
      _
    %184 = vsyncpa [#allocation4], 1
    %185 = vsyncpa [#allocation7], 1
    %186 = vsyncpa [#allocation10], 1
    %187 = vsyncpa [#allocation5], 1

</llo_original>
